<compile_context>
chip_gen: v5e
topology: v5e:2x2
jax: 0.10.0
libtpu: 0.0.40
codegen_flags: <defaults>
</compile_context>

<pallas_src>
import functools

import jax
import jax.numpy as jnp
from jax.experimental import pallas as pl
from jax.experimental.pallas import tpu as pltpu


_MIN_TM = 8        # sublane granularity
_MAX_TM = 2048     # per-step overhead fully amortized well before this


def _rmsnorm_fwd_kernel(x_ref, w_ref, y_ref, *, eps, inv_n):
    # x_ref: (TM, N) tile of rows; w_ref: (1, N) weight (resident); y_ref: (TM, N).
    x = x_ref[...].astype(jnp.float32)
    w = w_ref[...].astype(jnp.float32)
    mean_sq = jnp.sum(x * x, axis=-1, keepdims=True) * inv_n
    # 1/sqrt(sum(x^2)/N + eps) on the EUP; multiply instead of divide on the VPU.
    inv_rms = jax.lax.rsqrt(mean_sq + eps)
    # Triton does `x_hat.to(w.dtype) * w`.  For f32 weights (module default) this
    # is identical; for lower-precision weights we keep the math in f32 and cast
    # once at the store, which is at least as accurate and avoids an extra
    # pack/unpack round-trip per vreg.
    y = (x * inv_rms) * w
    y_ref[...] = y.astype(y_ref.dtype)


def _vmem_budget_bytes():
    """Scoped-VMEM budget used both for tile sizing and vmem_limit_bytes."""
    try:
        cap = pltpu.get_tpu_info().vmem_capacity_bytes
    except Exception:
        cap = 128 * 1024 * 1024            # v5e/v6e physical; conservative default
    # <= 48 MiB keeps headroom on v7x (64 MiB physical per TC) while being well
    # above the 16-32 MiB default scoped limit on v5e/v6e.
    return int(min(48 * 1024 * 1024, (cap * 3) // 4))


def _pick_tile_rows(m, n, itemsize, vmem_budget):
    """Largest row tile whose double-buffered pipeline footprint fits VMEM."""
    # 2 buffers each for input and output tiles, plus the f32 upcast temporary;
    # keep ~20% headroom for compiler scratch.
    per_row = 2 * n * itemsize + 2 * n * itemsize + 4 * n
    tm = (vmem_budget * 4 // 5) // max(per_row, 1)
    tm = max(_MIN_TM, min(_MAX_TM, (tm // _MIN_TM) * _MIN_TM))
    if m >= _MIN_TM:
        # Never exceed the 8-rounded-down row count; remainder rows are handled
        # by the cdiv grid + Pallas boundary masking, not by tm = M.
        tm = min(tm, (m // _MIN_TM) * _MIN_TM)
    else:
        tm = m                              # block dim == full array dim is allowed
    return max(1, tm)


def triton_rmsnorm(hidden_state, weight, eps=1e-6):
    """RMSNorm forward. hidden_state: [..., D], weight: [D]. Same shape/dtype out."""
    input_shape = hidden_state.shape
    n = input_shape[-1]
    x2d = hidden_state.reshape(-1, n)
    m = x2d.shape[0]

    itemsize = jnp.dtype(hidden_state.dtype).itemsize
    vmem_budget = _vmem_budget_bytes()
    tm = _pick_tile_rows(m, n, itemsize, vmem_budget)
    grid = (pl.cdiv(m, tm),)

    w2d = weight.reshape(1, n)
    kernel = functools.partial(
        _rmsnorm_fwd_kernel, eps=float(eps), inv_n=1.0 / float(n)
    )

    # NOTE: if D is not a multiple of 128 (lane width), stores are masked
    # (vst.msk); for real model sizes (D % 128 == 0) the output is lane-dense.
    out2d = pl.pallas_call(
        kernel,
        out_shape=jax.ShapeDtypeStruct((m, n), hidden_state.dtype),
        grid_spec=pltpu.PrefetchScalarGridSpec(
            num_scalar_prefetch=0,
            grid=grid,
            in_specs=[
                pl.BlockSpec((tm, n), lambda i: (i, 0)),   # row tile of x
                pl.BlockSpec((1, n), lambda i: (0, 0)),    # weight, stays resident
            ],
            out_specs=pl.BlockSpec((tm, n), lambda i: (i, 0)),
        ),
        compiler_params=pltpu.CompilerParams(
            dimension_semantics=("parallel",),
            vmem_limit_bytes=vmem_budget,
        ),
    )(x2d, w2d)

    return out2d.reshape(input_shape)


class TritonRMSNorm:
    """JAX/Pallas port of the PyTorch TritonRMSNorm module (forward only)."""
    # TODO(synk): backward (dx / dw Triton kernels) not implemented; forward only.

    def __init__(self, hidden_size, eps=1e-6):
        self.weight = jnp.ones((hidden_size,), dtype=jnp.float32)
        self.eps = eps

    def __call__(self, hidden_state):
        return triton_rmsnorm(hidden_state, self.weight, self.eps)


def _reference(x, w, eps):
    xf = x.astype(jnp.float32)
    rms_std = jnp.sqrt(jnp.sum(xf * xf, axis=-1, keepdims=True) / x.shape[-1] + eps)
    return ((xf / rms_std) * w.astype(jnp.float32)).astype(x.dtype)


if __name__ == "__main__":
    key = jax.random.PRNGKey(0)
    bs, L, D = 2, 8, 32
    x = jax.random.normal(key, (bs, L, D), dtype=jnp.float32)

    module = TritonRMSNorm(D, eps=1e-6)
    # Make the weight non-trivial but deterministic.
    module.weight = module.weight * 0.5 + jnp.arange(D, dtype=jnp.float32) * 0.01

    y = jax.block_until_ready(module(x))
    y_ref = _reference(x, module.weight, module.eps)
    assert y.shape == x.shape and y.dtype == x.dtype
    assert jnp.allclose(y, y_ref, atol=1e-5, rtol=1e-5)

    # Remainder path: M not a multiple of the row tile (cdiv grid, masked last block).
    x2 = jax.random.normal(jax.random.PRNGKey(1), (1, 13, D), dtype=jnp.float32)
    y2 = jax.block_until_ready(module(x2))
    assert jnp.allclose(y2, _reference(x2, module.weight, module.eps),
                        atol=1e-5, rtol=1e-5)

    print("KERNEL_OK")
</pallas_src>

<mosaic_0001>
module attributes {stable_mosaic.version = 11 : i64} {
  func.func @_rmsnorm_fwd_kernel(%arg0: i32, %arg1: memref<16x32xf32, #tpu.memory_space<vmem>>, %arg2: memref<1x32xf32, #tpu.memory_space<vmem>>, %arg3: memref<16x32xf32, #tpu.memory_space<vmem>>) attributes {dimension_semantics = [#tpu.dimension_semantics<parallel>], iteration_bounds = array<i64: 1>, scalar_prefetch = 0 : i64, scratch_operands = 0 : i64, tpu.core_type = #tpu.core_type<tc>, window_params = [{transform_indices = @transform_0, window_bounds = array<i64: 16, 32>}, {pipeline_mode = #tpu.pipeline_mode<synchronous>, transform_indices = @transform_1, window_bounds = array<i64: 1, 32>}, {transform_indices = @transform_2, window_bounds = array<i64: 16, 32>}]} {
    %c0 = arith.constant 0 : index
    %c0_0 = arith.constant 0 : index
    %0 = vector.load %arg1[%c0, %c0_0] : memref<16x32xf32, #tpu.memory_space<vmem>>, vector<16x32xf32>
    %c0_1 = arith.constant 0 : index
    %c0_2 = arith.constant 0 : index
    %1 = vector.load %arg2[%c0_1, %c0_2] : memref<1x32xf32, #tpu.memory_space<vmem>>, vector<1x32xf32>
    %2 = arith.mulf %0, %0 : vector<16x32xf32>
    %cst = arith.constant dense<0.000000e+00> : vector<16xf32>
    %3 = vector.multi_reduction <add>, %2, %cst [1] : vector<16x32xf32> to vector<16xf32>
    %4 = vector.shape_cast %3 : vector<16xf32> to vector<16x1xf32>
    %cst_3 = arith.constant 3.125000e-02 : f32
    %5 = vector.broadcast %cst_3 : f32 to vector<16x1xf32>
    %6 = arith.mulf %4, %5 : vector<16x1xf32>
    %cst_4 = arith.constant 9.99999997E-7 : f32
    %7 = vector.broadcast %cst_4 : f32 to vector<16x1xf32>
    %8 = arith.addf %6, %7 : vector<16x1xf32>
    %9 = math.rsqrt %8 : vector<16x1xf32>
    %10 = vector.broadcast %9 : vector<16x1xf32> to vector<16x32xf32>
    %11 = arith.mulf %0, %10 : vector<16x32xf32>
    %12 = vector.broadcast %1 : vector<1x32xf32> to vector<16x32xf32>
    %13 = arith.mulf %11, %12 : vector<16x32xf32>
    %c0_5 = arith.constant 0 : index
    %c0_6 = arith.constant 0 : index
    %14 = vector.load %arg3[%c0_5, %c0_6] : memref<16x32xf32, #tpu.memory_space<vmem>>, vector<16x32xf32>
    tpu.vector_store %arg3[%c0_5, %c0_6], %13 {strides = array<i32>} : memref<16x32xf32, #tpu.memory_space<vmem>>, vector<16x32xf32>,
    return
  }
  func.func @transform_0(%arg0: i32) -> (i32, i32) {
    %c0_i32 = arith.constant 0 : i32
    %c0_i32_0 = arith.constant 0 : i32
    return %arg0, %c0_i32 : i32, i32
  }
  func.func @transform_1(%arg0: i32) -> (i32, i32) {
    %c0_i32 = arith.constant 0 : i32
    %c0_i32_0 = arith.constant 0 : i32
    %c0_i32_1 = arith.constant 0 : i32
    return %c0_i32, %c0_i32_0 : i32, i32
  }
  func.func @transform_2(%arg0: i32) -> (i32, i32) {
    %c0_i32 = arith.constant 0 : i32
    %c0_i32_0 = arith.constant 0 : i32
    return %arg0, %c0_i32 : i32, i32
  }
}

</mosaic_0001>

<llo_original>
// kernel: tpu_custom_call.1
$region0: #{tpu_custom_call.1}
  #allocation0 [shape = 'u32[]', space=smem, size = 0x4, offset = 0x4, fixed_abs, tag = 'smem constant byte address 0x4 - core index']
  #allocation1 [shape = 'u32[72,128]{1,0:T(1,128)}', space=vmem, size = 0x9000, scoped, tag = 'internal scratch']
  %s0 = inlined_call_operand.hbm [shape: f32[16,32], index: 0, kind: input, shape index: {}]
  %s1 = inlined_call_operand.hbm [shape: f32[1,32], index: 1, kind: input, shape index: {}]
  %s2 = inlined_call_operand.hbm [shape: f32[16,32], index: 2, kind: output, shape index: {}]
  %s3 = sld [smem:[#allocation0]]
  $region26: #{tpu_custom_call.1} parent=0
    _
  %s5 = ssub.s32 1, %s3
  %s6 = scalar_select 0, %s5, %s3
  $region1: #{tpu_custom_call.1} parent=0
    #allocation2 [shape = 'u8[8192]{0}', space=vmem, size = 0x2000, scoped, tag = 'input window, operand 0, single buffered']
    #allocation3 [shape = 's32[1]{0}', space=sflag, size = 0x4, scoped, tag = 'scoped memory for tpu_custom_call.1']
    #allocation4 [shape = 's32[1]{0}', space=sflag, size = 0x4, scoped, tag = 'scoped memory for tpu_custom_call.1']
    #allocation5 [shape = 'u8[512]{0}', space=vmem, size = 0x400, scoped, tag = 'input window, operand 1, single buffered']
    #allocation6 [shape = 's32[1]{0}', space=sflag, size = 0x4, scoped, tag = 'scoped memory for tpu_custom_call.1']
    #allocation7 [shape = 'u8[8192]{0}', space=vmem, size = 0x2000, scoped, tag = 'output window, operand 0, single buffered']
    %7 = vsyncpa [#allocation3], 0
    %8 = vsyncpa [#allocation6], 0
    %9 = vsyncpa [#allocation4], 0
    // Predicated region
    $region2: #{tpu_custom_call.1} parent=1 // pred_check
      _
    $region3: #{tpu_custom_call.1} parent=1 // pred_check_branch
      %11 = sbr.rel (0) target = $region5
    $region4: #{tpu_custom_call.1} parent=1 // pred_region
      %13 = vsyncadd [#allocation3], 0
      %s14 = sshll.u32 %s0, 4
      %s15 = int_to_ptr.hbm [resolvable:$true] %s14
      %s16 = sshll.u32 [#allocation2], 4
      %s17 = int_to_ptr.vmem [resolvable:$true] %s16
      %22 = dma.hbm_to_vmem [thread:$0]  %s15, 256, %s17, [#allocation3], 128, 128, 8
    $region5: #{tpu_custom_call.1} parent=1 // pred_fallthru
      _
    // Predicated region
    $region6: #{tpu_custom_call.1} parent=1 // pred_check
      _
    $region7: #{tpu_custom_call.1} parent=1 // pred_check_branch
      %24 = sbr.rel (0) target = $region9
    $region8: #{tpu_custom_call.1} parent=1 // pred_region
      %26 = vsyncadd [#allocation6], 0
      %s28 = sshll.u32 %s1, 4
      %s29 = int_to_ptr.hbm [resolvable:$true] %s28
      %s30 = sshll.u32 [#allocation5], 4
      %s31 = int_to_ptr.vmem [resolvable:$true] %s30
      %33 = dma.hbm_to_vmem [thread:$0]  %s29, 16, %s31, [#allocation6]
    $region9: #{tpu_custom_call.1} parent=1 // pred_fallthru
      _
    // Predicated region
    $region10: #{tpu_custom_call.1} parent=1 // pred_check
      _
    $region11: #{tpu_custom_call.1} parent=1 // pred_check_branch
      %35 = sbr.rel (0) target = $region13
    $region12: #{tpu_custom_call.1} parent=1 // pred_region
      %37 = dma.done [#allocation3], 256
    $region13: #{tpu_custom_call.1} parent=1 // pred_fallthru
      _
    // Predicated region
    $region14: #{tpu_custom_call.1} parent=1 // pred_check
      _
    $region15: #{tpu_custom_call.1} parent=1 // pred_check_branch
      %39 = sbr.rel (0) target = $region17
    $region16: #{tpu_custom_call.1} parent=1 // pred_region
      %41 = dma.done [#allocation6], 16
    $region17: #{tpu_custom_call.1} parent=1 // pred_fallthru
      _
    %v42 = vld [vmem:[#allocation2] sm:$0xff]
    %v43 = vld [vmem:[#allocation2 + $0x8] sm:$0xff]
    %v44 = vld [vmem:[#allocation5] sm:$0x1]
    %v45 = vmul.f32 %v42, %v42
    %v46 = vmul.f32 %v43, %v43
    %vm47 = vcmask 261120
    %v48 = vsel %vm47, %v45, 0.0
    %49 = vadd.xlane.f32.xlu0 %v48
    %v50 = vpop.xlane.xlu0 %49
    %v51 = vsel %vm47, %v46, 0.0
    %52 = vadd.xlane.f32.xlu0 %v51
    %v53 = vpop.xlane.xlu0 %52
    %v54 = vmul.f32 %v50, 0.03125
    %v55 = vmul.f32 %v53, 0.03125
    %v56 = vadd.f32 %v54, 1e-06
    %v57 = vadd.f32 %v55, 1e-06
    %v58 = vrsqrt.pop %v56
    %v59 = vmul.f32 %v58, %v56
    %v60 = vmul.f32 %v59, %v58
    %v61 = vmul.f32 0.5, %v60
    %v62 = vsub.f32 1.5, %v61
    %v63 = vmul.f32 %v58, %v62
    %vm64 = vweird.f32 %v56
    %vm65 = vweird.f32 %v58
    %vm66 = vmor %vm64, %vm65
    %v67 = vsel %vm66, %v58, %v63
    %v68 = vrsqrt.pop %v57
    %v69 = vmul.f32 %v68, %v57
    %v70 = vmul.f32 %v69, %v68
    %v71 = vmul.f32 0.5, %v70
    %v72 = vsub.f32 1.5, %v71
    %v73 = vmul.f32 %v68, %v72
    %vm74 = vweird.f32 %v57
    %vm75 = vweird.f32 %v68
    %vm76 = vmor %vm74, %vm75
    %v77 = vsel %vm76, %v68, %v73
    %v78 = vmul.f32 %v42, %v67
    %v79 = vmul.f32 %v43, %v77
    %v81 = vperm.slane %v44, 0
    %v83 = vmul.f32 %v78, %v81
    %v84 = vmul.f32 %v79, %v81
    %85 = vst.msk [vmem:[#allocation7] sm:$0xff] %vm47, %v83
    %86 = vst.msk [vmem:[#allocation7 + $0x8] sm:$0xff] %vm47, %v84
    // Predicated region
    $region18: #{tpu_custom_call.1} parent=1 // pred_check
      _
    $region19: #{tpu_custom_call.1} parent=1 // pred_check_branch
      %88 = sbr.rel (0) target = $region21
    $region20: #{tpu_custom_call.1} parent=1 // pred_region
      %90 = vsyncadd [#allocation4], 0
      %s91 = sshll.u32 [#allocation7], 4
      %s92 = int_to_ptr.vmem [resolvable:$true] %s91
      %s93 = sshll.u32 %s2, 4
      %s94 = int_to_ptr.hbm [resolvable:$true] %s93
      %99 = dma.vmem_to_hbm [thread:$0]  %s92, 256, %s94, [#allocation4], 128, 128, 8
    $region21: #{tpu_custom_call.1} parent=1 // pred_fallthru
      _
    // Predicated region
    $region22: #{tpu_custom_call.1} parent=1 // pred_check
      _
    $region23: #{tpu_custom_call.1} parent=1 // pred_check_branch
      %101 = sbr.rel (0) target = $region25
    $region24: #{tpu_custom_call.1} parent=1 // pred_region
      %103 = dma.done [#allocation4], 256
    $region25: #{tpu_custom_call.1} parent=1 // pred_fallthru
      _
    %104 = vsyncpa [#allocation3], 1
    %105 = vsyncpa [#allocation6], 1
    %106 = vsyncpa [#allocation4], 1

</llo_original>
